<compile_context>
chip_gen: v5e
topology: v5e:2x2
jax: 0.10.0
libtpu: 0.0.40
codegen_flags: <defaults>
</compile_context>

<pallas_src>
import functools

import jax
import jax.numpy as jnp
from jax.experimental import pallas as pl
from jax.experimental.pallas import tpu as pltpu

_NEG = -1e30  # large-but-finite "minus infinity" (avoids inf-inf -> NaN)


def _lse_kernel(x_ref, out_ref, m_sc, l_sc, *, scale, num_classes):
    """Online logsumexp of scale * x along the class (last) axis."""
    c_idx = pl.program_id(1)
    n_c = pl.num_programs(1)
    bb, bc = x_ref.shape

    @pl.when(c_idx == 0)
    def _init():
        m_sc[...] = jnp.full(m_sc.shape, _NEG, jnp.float32)
        l_sc[...] = jnp.zeros_like(l_sc)

    # Scaled logits in f32 (HBM load stays in the input's native dtype).
    x = x_ref[...].astype(jnp.float32) * scale

    if num_classes % bc != 0:
        # Ragged last class tile: padded columns (possibly garbage/NaN) must
        # not contribute.  Mask BEFORE anything feeds the accumulators.
        col = jax.lax.broadcasted_iota(jnp.int32, (bb, bc), 1) + c_idx * bc
        x = jnp.where(col < num_classes, x, _NEG)

    # Per-tile cross-lane reductions (XLU -- free slot, no MXU in this kernel),
    # then the canonical two-exp online-softmax merge on (bb, 1) accumulators.
    t_max = jnp.max(x, axis=-1, keepdims=True)                       # (bb, 1)
    m_old = m_sc[...]
    m_new = jnp.maximum(m_old, t_max)
    t_sum = jnp.sum(jnp.exp(x - m_new), axis=-1, keepdims=True)      # (bb, 1)
    # At init m_old = -1e30 -> exp underflows to 0 and l_old is 0: no NaN.
    l_sc[...] = l_sc[...] * jnp.exp(m_old - m_new) + t_sum
    m_sc[...] = m_new

    @pl.when(c_idx == n_c - 1)
    def _finalize():
        # Every class tile covers >= 1 real column, so m_sc is finite and
        # l_sc >= 1 for every row here.
        out_ref[...] = m_sc[...] + jnp.log(l_sc[...])


def _default_block_c(C):
    if C <= 4096:
        return C                       # single class tile, no ragged mask
    for bc in (4096, 3072, 2048, 1536, 1024, 512, 256, 128):
        if C % bc == 0:
            return bc                  # exact tiling, no ragged mask
    return 2048                        # ragged fallback (mask on every step)


def _default_block_b(B):
    if B > 256:
        return 256
    if B > 8 and B % 16 == 0:
        return B // 2                  # >= 2 batch tiles -> v7x 2-TC sharding
    return B


def cosface_loss(inputs, targets, scale=30.0, margin=0.3,
                 block_b=None, block_c=None):
    """inputs: (B, C) cosine logits, targets: (B,) int -> scalar f32 mean loss."""
    B, C = inputs.shape
    scale = float(scale)
    margin = float(margin)

    if block_b is None:
        block_b = _default_block_b(B)
    if block_c is None:
        block_c = _default_block_c(C)
    block_b = min(block_b, B)
    block_c = min(block_c, C)

    grid = (pl.cdiv(B, block_b), pl.cdiv(C, block_c))

    # Kernel: per-row logsumexp(scale * inputs).
    lse = pl.pallas_call(
        functools.partial(_lse_kernel, scale=scale, num_classes=C),
        out_shape=jax.ShapeDtypeStruct((B, 1), jnp.float32),
        grid=grid,
        in_specs=[pl.BlockSpec((block_b, block_c), lambda b, c: (b, c))],
        out_specs=pl.BlockSpec((block_b, 1), lambda b, c: (b, 0)),
        scratch_shapes=[
            pltpu.VMEM((block_b, 1), jnp.float32),   # running row max
            pltpu.VMEM((block_b, 1), jnp.float32),   # running row exp-sum
        ],
        compiler_params=pltpu.CompilerParams(
            dimension_semantics=("parallel", "arbitrary")),
    )(inputs)[:, 0]

    # Wrapper-side CosFace margin correction (O(B) work).
    t_idx = targets.reshape(B, 1).astype(jnp.int32)
    xt = jnp.take_along_axis(inputs, t_idx, axis=1)[:, 0].astype(jnp.float32) * scale
    xtm = xt - scale * margin
    # Replace exp(s*x_t) by exp(s*(x_t - m)) inside the sum-exp:
    #   arg = exp(xtm - lse) - exp(xt - lse)  in  [exp(-s*m) - 1, 0]
    arg = jnp.exp(xtm - lse) - jnp.exp(xt - lse)
    arg = jnp.maximum(arg, jnp.exp(-scale * margin) - 1.0)   # exact lower bound
    lse_corr = lse + jnp.log1p(arg)
    return jnp.mean(lse_corr - xtm)


def _reference(inputs, targets, scale=30.0, margin=0.3):
    one_hot = jax.nn.one_hot(targets, inputs.shape[1], dtype=inputs.dtype)
    out = scale * (inputs - one_hot * margin)
    logp = jax.nn.log_softmax(out, axis=-1)
    nll = -jnp.take_along_axis(logp, targets[:, None], axis=1)[:, 0]
    return jnp.mean(nll)


if __name__ == "__main__":
    key = jax.random.PRNGKey(0)
    k1, k2 = jax.random.split(key)
    B, C = 16, 600
    # CosFace inputs are cosine similarities in [-1, 1].
    inputs = jax.random.uniform(k1, (B, C), jnp.float32, minval=-1.0, maxval=1.0)
    targets = jax.random.randint(k2, (B,), 0, C, dtype=jnp.int32)

    # Tiled path: 2 batch tiles x 3 class tiles (last tile ragged: 600 = 2*256 + 88).
    loss_tiled = cosface_loss(inputs, targets, scale=30.0, margin=0.3,
                              block_b=8, block_c=256)
    # Default path: 2 batch tiles x single class tile (C <= 4096).
    loss_default = cosface_loss(inputs, targets, scale=30.0, margin=0.3)
    loss_tiled, loss_default = jax.block_until_ready((loss_tiled, loss_default))

    ref = _reference(inputs, targets, scale=30.0, margin=0.3)
    assert jnp.allclose(loss_tiled, ref, rtol=1e-5, atol=1e-3), (loss_tiled, ref)
    assert jnp.allclose(loss_default, ref, rtol=1e-5, atol=1e-3), (loss_default, ref)
    print("KERNEL_OK")
</pallas_src>

<mosaic_0001>
module attributes {stable_mosaic.version = 11 : i64} {
  func.func @_lse_kernel(%arg0: i32, %arg1: i32, %arg2: memref<8x256xf32, #tpu.memory_space<vmem>>, %arg3: memref<8x1xf32, #tpu.memory_space<vmem>>, %arg4: memref<8x1xf32, #tpu.memory_space<vmem>>, %arg5: memref<8x1xf32, #tpu.memory_space<vmem>>) attributes {dimension_semantics = [#tpu.dimension_semantics<parallel>, #tpu.dimension_semantics<arbitrary>], iteration_bounds = array<i64: 2, 3>, scalar_prefetch = 0 : i64, scratch_operands = 2 : i64, tpu.core_type = #tpu.core_type<tc>, window_params = [{transform_indices = @transform_0, window_bounds = array<i64: 8, 256>}, {transform_indices = @transform_1, window_bounds = array<i64: 8, 1>}]} {
    %c0_i32 = arith.constant 0 : i32
    %0 = arith.cmpi eq, %arg1, %c0_i32 : i32
    %1 = arith.extui %0 : i1 to i32
    %c0_i32_0 = arith.constant 0 : i32
    %2 = arith.cmpi ne, %1, %c0_i32_0 : i32
    scf.if %2 {
      %cst_14 = arith.constant -1.000000e+30 : f32
      %33 = vector.broadcast %cst_14 : f32 to vector<8x1xf32>
      %c0_15 = arith.constant 0 : index
      %c0_16 = arith.constant 0 : index
      %34 = vector.load %arg4[%c0_15, %c0_16] : memref<8x1xf32, #tpu.memory_space<vmem>>, vector<8x1xf32>
      tpu.vector_store %arg4[%c0_15, %c0_16], %33 {strides = array<i32>} : memref<8x1xf32, #tpu.memory_space<vmem>>, vector<8x1xf32>,
      %cst_17 = arith.constant 0.000000e+00 : f32
      %35 = vector.broadcast %cst_17 : f32 to vector<8x1xf32>
      %c0_18 = arith.constant 0 : index
      %c0_19 = arith.constant 0 : index
      %36 = vector.load %arg5[%c0_18, %c0_19] : memref<8x1xf32, #tpu.memory_space<vmem>>, vector<8x1xf32>
      tpu.vector_store %arg5[%c0_18, %c0_19], %35 {strides = array<i32>} : memref<8x1xf32, #tpu.memory_space<vmem>>, vector<8x1xf32>,
    } else {
    }
    %c0 = arith.constant 0 : index
    %c0_1 = arith.constant 0 : index
    %3 = vector.load %arg2[%c0, %c0_1] : memref<8x256xf32, #tpu.memory_space<vmem>>, vector<8x256xf32>
    %cst = arith.constant 3.000000e+01 : f32
    %4 = vector.broadcast %cst : f32 to vector<8x256xf32>
    %5 = arith.mulf %3, %4 : vector<8x256xf32>
    %6 = tpu.iota {dimensions = array<i32: 1>} : vector<8x256xi32>
    %c256_i32 = arith.constant 256 : i32
    %7 = arith.muli %arg1, %c256_i32 : i32
    %8 = vector.broadcast %7 : i32 to vector<8x256xi32>
    %9 = arith.addi %6, %8 : vector<8x256xi32>
    %c600_i32 = arith.constant 600 : i32
    %10 = vector.broadcast %c600_i32 : i32 to vector<8x256xi32>
    %11 = arith.cmpi slt, %9, %10 : vector<8x256xi32>
    %cst_2 = arith.constant -1.000000e+30 : f32
    %12 = vector.broadcast %cst_2 : f32 to vector<8x256xf32>
    %13 = arith.select %11, %5, %12 : vector<8x256xi1>, vector<8x256xf32>
    %cst_3 = arith.constant dense<0xFF800000> : vector<8xf32>
    %14 = vector.multi_reduction <maximumf>, %13, %cst_3 [1] : vector<8x256xf32> to vector<8xf32>
    %15 = vector.shape_cast %14 : vector<8xf32> to vector<8x1xf32>
    %c0_4 = arith.constant 0 : index
    %c0_5 = arith.constant 0 : index
    %16 = vector.load %arg4[%c0_4, %c0_5] : memref<8x1xf32, #tpu.memory_space<vmem>>, vector<8x1xf32>
    %17 = arith.maximumf %16, %15 : vector<8x1xf32>
    %18 = vector.broadcast %17 : vector<8x1xf32> to vector<8x256xf32>
    %19 = arith.subf %13, %18 : vector<8x256xf32>
    %20 = math.exp %19 : vector<8x256xf32>
    %cst_6 = arith.constant dense<0.000000e+00> : vector<8xf32>
    %21 = vector.multi_reduction <add>, %20, %cst_6 [1] : vector<8x256xf32> to vector<8xf32>
    %22 = vector.shape_cast %21 : vector<8xf32> to vector<8x1xf32>
    %c0_7 = arith.constant 0 : index
    %c0_8 = arith.constant 0 : index
    %23 = vector.load %arg5[%c0_7, %c0_8] : memref<8x1xf32, #tpu.memory_space<vmem>>, vector<8x1xf32>
    %24 = arith.subf %16, %17 : vector<8x1xf32>
    %25 = math.exp %24 : vector<8x1xf32>
    %26 = arith.mulf %23, %25 : vector<8x1xf32>
    %27 = arith.addf %26, %22 : vector<8x1xf32>
    %c0_9 = arith.constant 0 : index
    %c0_10 = arith.constant 0 : index
    %28 = vector.load %arg5[%c0_9, %c0_10] : memref<8x1xf32, #tpu.memory_space<vmem>>, vector<8x1xf32>
    tpu.vector_store %arg5[%c0_9, %c0_10], %27 {strides = array<i32>} : memref<8x1xf32, #tpu.memory_space<vmem>>, vector<8x1xf32>,
    %c0_11 = arith.constant 0 : index
    %c0_12 = arith.constant 0 : index
    %29 = vector.load %arg4[%c0_11, %c0_12] : memref<8x1xf32, #tpu.memory_space<vmem>>, vector<8x1xf32>
    tpu.vector_store %arg4[%c0_11, %c0_12], %17 {strides = array<i32>} : memref<8x1xf32, #tpu.memory_space<vmem>>, vector<8x1xf32>,
    %c2_i32 = arith.constant 2 : i32
    %30 = arith.cmpi eq, %arg1, %c2_i32 : i32
    %31 = arith.extui %30 : i1 to i32
    %c0_i32_13 = arith.constant 0 : i32
    %32 = arith.cmpi ne, %31, %c0_i32_13 : i32
    scf.if %32 {
      %c0_14 = arith.constant 0 : index
      %c0_15 = arith.constant 0 : index
      %33 = vector.load %arg4[%c0_14, %c0_15] : memref<8x1xf32, #tpu.memory_space<vmem>>, vector<8x1xf32>
      %c0_16 = arith.constant 0 : index
      %c0_17 = arith.constant 0 : index
      %34 = vector.load %arg5[%c0_16, %c0_17] : memref<8x1xf32, #tpu.memory_space<vmem>>, vector<8x1xf32>
      %35 = math.log %34 : vector<8x1xf32>
      %36 = arith.addf %33, %35 : vector<8x1xf32>
      %c0_18 = arith.constant 0 : index
      %c0_19 = arith.constant 0 : index
      %37 = vector.load %arg3[%c0_18, %c0_19] : memref<8x1xf32, #tpu.memory_space<vmem>>, vector<8x1xf32>
      tpu.vector_store %arg3[%c0_18, %c0_19], %36 {strides = array<i32>} : memref<8x1xf32, #tpu.memory_space<vmem>>, vector<8x1xf32>,
    } else {
    }
    return
  }
  func.func @transform_0(%arg0: i32, %arg1: i32) -> (i32, i32) {
    %c0_i32 = arith.constant 0 : i32
    return %arg0, %arg1 : i32, i32
  }
  func.func @transform_1(%arg0: i32, %arg1: i32) -> (i32, i32) {
    %c0_i32 = arith.constant 0 : i32
    %c0_i32_0 = arith.constant 0 : i32
    return %arg0, %c0_i32 : i32, i32
  }
}

</mosaic_0001>

<llo_original>
// kernel: tpu_custom_call.1
$region0: #{tpu_custom_call.1}
  #allocation0 [shape = 'u32[]', space=smem, size = 0x4, offset = 0x4, fixed_abs, tag = 'smem constant byte address 0x4 - core index']
  #allocation1 [shape = 'u32[72,128]{1,0:T(1,128)}', space=vmem, size = 0x9000, scoped, tag = 'internal scratch']
  #allocation2 [shape = 'f32[8,1]{1,0:T(8,128)}', space=vmem, size = 0x1000, scoped, tag = 'scratch operand']
  #allocation3 [shape = 'f32[8,1]{1,0:T(8,128)}', space=vmem, size = 0x1000, scoped, tag = 'scratch operand']
  %s0 = inlined_call_operand.hbm [shape: f32[16,600], index: 0, kind: input, shape index: {}]
  %s1 = inlined_call_operand.vmem [shape: f32[16,1], index: 1, kind: output, shape index: {}]
  %s2 = sld [smem:[#allocation0]]
  $region49: #{tpu_custom_call.1} parent=0
    _
  %s4 = ssub.s32 1, %s2
  %s5 = scalar_select 0, %s4, %s2
  $region1: #{tpu_custom_call.1} parent=0
    #allocation4 [shape = 'u8[16384]{0}', space=vmem, size = 0x4000, scoped, tag = 'input window, operand 0']
    #allocation5 [shape = 's32[2]{0}', space=sflag, size = 0x8, scoped, tag = 'scoped memory for tpu_custom_call.1']
    %6 = vsyncpa [#allocation5], 0
    %s7 = scalar_lea.sflag [#allocation5], 1
    %8 = vsyncpa %s7, 0
    loop: start=0, step=1, limit=8
    $region2: #{tpu_custom_call.1} parent=1 // loop_pre_header
      _
    $region3: #{tpu_custom_call.1} parent=1 // loop_header
      %s10 = sphi 0, %s14
      %p11 = scmp.ge.s32.totalorder %s10, 8
      %s17 = sphi 0, %s29
      %s18 = sphi 0, %s25
      %s19 = sphi 0, %s17
      %s20 = sphi 0, %s18
      %s21 = sphi 0, %s19
      %s22 = sphi 0, %s20
      %s34 = sphi 0, %s36
      %s37 = sphi 0, %s34
      %s38 = sphi 0, %s37
      %s54 = sphi 0, %s38
      %s60 = sphi 0, %s62
      %s63 = sphi 0, %s60
      %s64 = sphi 0, %s63
      %s80 = sphi 0, %s64
    $region4: #{tpu_custom_call.1} parent=1 // loop_header_branch
      %13 = sbr.rel (%p11) target = $region8
    $region5: #{tpu_custom_call.1} parent=1 // loop_body
      %s15 = ssub.s32 %s10, 1
      %s16 = ssub.s32 %s10, 2
      %s23 = sadd.s32 1, %s18
      %p24 = scmp.ge.s32.totalorder %s23, 3
      %s25 = scalar_select %p24, 0, %s23
      %s26 = sadd.s32 1, %s17
      %s27 = scalar_select %p24, %s26, %s17
      %p28 = scmp.ge.s32.totalorder %s27, 2
      %s29 = scalar_select %p28, 0, %s27
      %s30 = ssub.s32 %s17, %s29
      %s31 = ssub.s32 %s18, %s25
      %s32 = sor.u32 %s30, %s31
      %p33 = scmp.eq.s32.totalorder %s32, 0
      %s35 = sadd.s32 %s34, 1
      %s36 = scalar_select %p33, %s34, %s35
      %p39 = pneg %p33
      %p40 = scmp.eq.s32.totalorder %s10, 5
      %p41 = por %p39, %p40
      %p42 = scmp.ne.s32.totalorder %s34, %s37
      %p43 = scmp.eq.s32.totalorder %s10, 0
      %p44 = por %p42, %p43
      %p45 = scmp.ne.s32.totalorder %s34, %s37
      %p46 = scmp.eq.s32.totalorder %s15, 5
      %p47 = por %p45, %p46
      %p48 = scmp.ne.s32.totalorder %s37, %s38
      %p49 = scmp.eq.s32.totalorder %s15, 0
      %p50 = por %p48, %p49
      %p51 = scmp.ne.s32.totalorder %s37, %s38
      %p52 = scmp.eq.s32.totalorder %s16, 5
      %p53 = por %p51, %p52
      %p55 = scmp.ne.s32.totalorder %s38, %s54
      %p56 = scmp.eq.s32.totalorder %s16, 0
      %p57 = por %p55, %p56
      %s58 = ssub.s32 %s17, %s29
      %p59 = scmp.eq.s32.totalorder %s58, 0
      %s61 = sadd.s32 %s60, 1
      %s62 = scalar_select %p59, %s60, %s61
      %p65 = pneg %p59
      %p66 = scmp.eq.s32.totalorder %s10, 5
      %p67 = por %p65, %p66
      %p68 = scmp.ne.s32.totalorder %s60, %s63
      %p69 = scmp.eq.s32.totalorder %s10, 0
      %p70 = por %p68, %p69
      %p71 = scmp.ne.s32.totalorder %s60, %s63
      %p72 = scmp.eq.s32.totalorder %s15, 5
      %p73 = por %p71, %p72
      %p74 = scmp.ne.s32.totalorder %s63, %s64
      %p75 = scmp.eq.s32.totalorder %s15, 0
      %p76 = por %p74, %p75
      %p77 = scmp.ne.s32.totalorder %s63, %s64
      %p78 = scmp.eq.s32.totalorder %s16, 5
      %p79 = por %p77, %p78
      %p81 = scmp.ne.s32.totalorder %s64, %s80
      %p82 = scmp.eq.s32.totalorder %s16, 0
      %p83 = por %p81, %p82
      %p84 = scmp.le.s32.totalorder 1, %s10
      %p85 = scmp.lt.s32.totalorder %s10, 7
      %p86 = pnand %p84, %p85
      %p87 = pneg %p86
      // Predicated region
      $region9: #{tpu_custom_call.1} parent=5 // pred_check
        _
      $region10: #{tpu_custom_call.1} parent=5 // pred_check_branch
        %89 = sbr.rel (%p86) target = $region12
      $region11: #{tpu_custom_call.1} parent=5 // pred_region
        %s90 = ssub.s32 %s10, 1
      $region12: #{tpu_custom_call.1} parent=5 // pred_fallthru
        _
      %p91 = scmp.lt.s32.totalorder %s10, 6
      // Predicated region
      $region13: #{tpu_custom_call.1} parent=5 // pred_check
        %p92 = pneg %p91
      $region14: #{tpu_custom_call.1} parent=5 // pred_check_branch
        %94 = sbr.rel (%p92) target = $region16
      $region15: #{tpu_custom_call.1} parent=5 // pred_region
        // Predicated region
        $region17: #{tpu_custom_call.1} parent=15 // pred_check
          %p95 = pneg %p44
        $region18: #{tpu_custom_call.1} parent=15 // pred_check_branch
          %97 = sbr.rel (%p95) target = $region20
        $region19: #{tpu_custom_call.1} parent=15 // pred_region
          %s98 = sand.u32 %s34, 1
          %s99 = scalar_lea.sflag [#allocation5], %s98
          %s100 = sand.u32 %s34, 1
          %s101 = smul.addr %s100, 16
          %s102 = scalar_lea.vmem [#allocation4], %s101
          %s103 = smul.u32 2, %s18
          %s104 = ssub.s32 5, %s103
          %p105 = scmp.lt.s32.totalorder %s104, 2
          %s106 = scalar_select %p105, %s104, 2
          %s107 = smul.u32 8, %s106
          %s108 = ssub.s32 16, %s107
          %s109 = sshll.u32 %s108, 4
          %110 = vsyncadd %s99, %s109
          %p111 = scmp.ne.s32.totalorder 0, %s107
          %s112 = smul.addr %s17, 5
          %s113 = sadd.s32 %s103, %s112
          %s114 = smul.addr %s113, 8
          %s115 = scalar_lea.hbm %s0, %s114
          %s116 = smul.u32 %s106, 8
          %s117 = sshll.u32 %s116, 4
          %s118 = sshll.u32 %s115, 4
          %s119 = int_to_ptr.hbm [resolvable:$true] %s118
          %s120 = sshll.u32 %s102, 4
          %s121 = int_to_ptr.vmem [resolvable:$true] %s120
          %123 = dma.hbm_to_vmem [thread:$0]  (%p111), %s119, %s117, %s121, %s99
        $region20: #{tpu_custom_call.1} parent=15 // pred_fallthru
          _
      $region16: #{tpu_custom_call.1} parent=5 // pred_fallthru
        _
      %p124 = scmp.le.s32.totalorder 1, %s10
      %p125 = scmp.lt.s32.totalorder %s10, 7
      %p126 = pnand %p124, %p125
      %p127 = pneg %p126
      // Predicated region
      $region21: #{tpu_custom_call.1} parent=5 // pred_check
        _
      $region22: #{tpu_custom_call.1} parent=5 // pred_check_branch
        %129 = sbr.rel (%p126) target = $region24
      $region23: #{tpu_custom_call.1} parent=5 // pred_region
        %s130 = ssub.s32 %s10, 1
        %s131 = sand.u32 %s37, 1
        %s132 = scalar_lea.sflag [#allocation5], %s131
        %s133 = sand.u32 %s37, 1
        %s134 = smul.addr %s133, 16
        %s135 = scalar_lea.vmem [#allocation4], %s134
        // Predicated region
        $region25: #{tpu_custom_call.1} parent=23 // pred_check
          %p136 = pneg %p50
        $region26: #{tpu_custom_call.1} parent=23 // pred_check_branch
          %138 = sbr.rel (%p136) target = $region28
        $region27: #{tpu_custom_call.1} parent=23 // pred_region
          %140 = dma.done %s132, 256
        $region28: #{tpu_custom_call.1} parent=23 // pred_fallthru
          _
        %s141 = sand.u32 %s37, 1
        %s142 = scalar_lea.sflag [#allocation5], %s141
        %s143 = sand.u32 %s37, 1
        %s144 = smul.addr %s143, 16
        %s145 = scalar_lea.vmem [#allocation4], %s144
        %p146 = pneg %p50
        %p147 = pneg %p47
        %p148 = pneg %p76
        %p149 = pneg %p73
        %p150 = scmp.lt.s32.totalorder %s19, 1
        %s151 = scalar_select %p150, %s19, 1
        %s152 = smul.addr %s151, 8
        %s153 = scalar_lea.vmem %s1, %s152
        %s154 = smul.u32 2, %s20
        %s155 = ssub.s32 5, %s154
        %p156 = scmp.lt.s32.totalorder %s155, 2
        %s157 = scalar_select %p156, %s155, 2
        %s158 = smul.u32 8, %s157
        %p159 = scmp.lt.s32.totalorder %s19, 1
        %s160 = scalar_select %p159, %s19, 1
        %s161 = smul.addr %s160, 8
        %s162 = scalar_lea.vmem %s1, %s161
        %p163 = scmp.eq.s32.totalorder %s20, 0
        // Predicated region
        $region29: #{tpu_custom_call.1} parent=23 // pred_check
          %p164 = pneg %p163
        $region30: #{tpu_custom_call.1} parent=23 // pred_check_branch
          %166 = sbr.rel (%p164) target = $region32
        $region31: #{tpu_custom_call.1} parent=23 // pred_region
          %vm167 = vcmask 7168
          %168 = vst.msk [vmem:[#allocation2] sm:$0xff] %vm167, -1e+30
          %169 = vst.msk [vmem:[#allocation3] sm:$0xff] %vm167, 0.0
        $region32: #{tpu_custom_call.1} parent=23 // pred_fallthru
          _
        %v170 = vld [vmem:[%s135] sm:$0xff]
        %v171 = vld [vmem:[%s135 + $0x8] sm:$0xff]
        %v172 = vmul.f32 %v170, 30.0
        %v173 = vmul.f32 %v171, 30.0
        %v174 = vlaneseq
        %v175 = vand.u32 %v174, 127
        %v176 = vadd.s32 %v175, 128
        %s177 = smul.u32 %s20, 256
        %v178 = vstv %s177
        %v179 = vadd.s32 %v175, %v178
        %v180 = vadd.s32 %v176, %v178
        %vm181 = vcmp.lt.s32.totalorder %v179, 600
        %vm182 = vcmp.lt.s32.totalorder %v180, 600
        %v183 = vsel %vm181, %v172, -1e+30
        %v184 = vsel %vm182, %v173, -1e+30
        %v185 = vmax.f32 %v183, %v184
        %186 = vmax.xlane.f32.xlu0 %v185
        %v187 = vpop.xlane.xlu0 %186
        %v188 = vld [vmem:[#allocation2] sm:$0xff]
        %v189 = vmax.f32 %v188, %v187
        %191 = vset.pattern.permute.xlu0 0
        %192 = vperm.xlu0 %191, %v189
        %v193 = vpop.permute.xlu0 %192
        %v195 = vsub.f32 %v183, %v193
        %v196 = vsub.f32 %v184, %v193
        %v197 = vmul.f32 %v195, 1.442695
        %v198 = vpow.pop %v197
        %v199 = vmul.f32 %v196, 1.442695
        %v200 = vpow.pop %v199
        %v201 = vadd.f32 %v198, %v200
        %202 = vadd.xlane.f32.xlu0 %v201
        %v203 = vpop.xlane.xlu0 %202
        %v204 = vld [vmem:[#allocation3] sm:$0xff]
        %v205 = vsub.f32 %v188, %v189
        %v206 = vmul.f32 %v205, 1.442695
        %v207 = vpow.pop %v206
        %v208 = vmul.f32 %v204, %v207
        %v209 = vadd.f32 %v208, %v203
        %vm210 = vcmask 7168
        %211 = vst.msk [vmem:[#allocation3] sm:$0xff] %vm210, %v209
        %212 = vst.msk [vmem:[#allocation2] sm:$0xff] %vm210, %v189
        %p213 = scmp.eq.s32.totalorder %s20, 2
        // Predicated region
        $region33: #{tpu_custom_call.1} parent=23 // pred_check
          %p214 = pneg %p213
        $region34: #{tpu_custom_call.1} parent=23 // pred_check_branch
          %216 = sbr.rel (%p214) target = $region36
        $region35: #{tpu_custom_call.1} parent=23 // pred_region
          %v217 = vld [vmem:[#allocation2] sm:$0xff]
          %v218 = vld [vmem:[#allocation3] sm:$0xff]
          %v219 = vlog2.pop %v218
          %v220 = vmul.f32 %v219, 0.6931472
          %v221 = vadd.f32 %v217, %v220
          %222 = vst.msk [vmem:[%s162] sm:$0xff] %vm210, %v221
        $region36: #{tpu_custom_call.1} parent=23 // pred_fallthru
          _
        %p223 = scmp.lt.s32.totalorder %s19, 1
        %s224 = scalar_select %p223, %s19, 1
        %s225 = smul.addr %s224, 8
        %s226 = scalar_lea.vmem %s1, %s225
        // Predicated region
        $region37: #{tpu_custom_call.1} parent=23 // pred_check
          %p227 = pneg %p73
        $region38: #{tpu_custom_call.1} parent=23 // pred_check_branch
          %229 = sbr.rel (%p227) target = $region40
        $region39: #{tpu_custom_call.1} parent=23 // pred_region
          _
        $region40: #{tpu_custom_call.1} parent=23 // pred_fallthru
          _
      $region24: #{tpu_custom_call.1} parent=5 // pred_fallthru
        _
      %p230 = scmp.le.s32.totalorder 2, %s10
      // Predicated region
      $region41: #{tpu_custom_call.1} parent=5 // pred_check
        %p231 = pneg %p230
      $region42: #{tpu_custom_call.1} parent=5 // pred_check_branch
        %233 = sbr.rel (%p231) target = $region44
      $region43: #{tpu_custom_call.1} parent=5 // pred_region
        %s234 = ssub.s32 %s10, 2
        // Predicated region
        $region45: #{tpu_custom_call.1} parent=43 // pred_check
          %p235 = pneg %p79
        $region46: #{tpu_custom_call.1} parent=43 // pred_check_branch
          %237 = sbr.rel (%p235) target = $region48
        $region47: #{tpu_custom_call.1} parent=43 // pred_region
          %p238 = scmp.lt.s32.totalorder %s21, 1
          %s239 = scalar_select %p238, %s21, 1
          %s240 = smul.addr %s239, 8
          %s241 = scalar_lea.vmem %s1, %s240
        $region48: #{tpu_custom_call.1} parent=43 // pred_fallthru
          _
      $region44: #{tpu_custom_call.1} parent=5 // pred_fallthru
        _
    $region6: #{tpu_custom_call.1} parent=1 // loop_footer
      %s14 = sadd.s32 1, %s10
    $region7: #{tpu_custom_call.1} parent=1 // loop_footer_branch
      %9 = sbr.rel target = $region3
    $region8: #{tpu_custom_call.1} parent=1 // loop_exit
      _
    %242 = vsyncpa [#allocation5], 1
    %s243 = scalar_lea.sflag [#allocation5], 1
    %244 = vsyncpa %s243, 1

</llo_original>
